<compile_context>
chip_gen: v7x
topology: tpu7x:2x2x1
jax: 0.10.0
libtpu: 0.0.40
codegen_flags: <defaults>
</compile_context>

<pallas_src>
import functools

import jax
import jax.numpy as jnp
from jax.experimental import pallas as pl
from jax.experimental.pallas import tpu as pltpu


def _conv_tile(x_ref, w_ref, *, k, stride, tile_h, wo):
    """f32 conv accumulator for one (batch, row-tile) block.

    x_ref: (stride, (tile_h+halo)*wo, k*Cin)  bf16 row-phase planes; the k
           column taps are packed into the lane/contraction dim.
    w_ref: (k, k*Cin, Cout_pad)               bf16 per-row-tap weight matrices.
    Returns acc of shape (tile_h*wo, Cout_pad), f32.
    """
    rows = tile_h * wo
    acc = None
    for ih in range(k):
        p = ih % stride                   # which row-phase plane
        dh = ih // stride                 # row offset inside that plane
        xt = x_ref[p, pl.ds(dh * wo, rows), :]        # Ref slice (no full-plane load)
        part = jnp.dot(xt, w_ref[ih], preferred_element_type=jnp.float32)
        acc = part if acc is None else acc + part
    return acc


def _conv_stats_kernel(x_ref, w_ref, y_ref, sum_ref, sumsq_ref, *,
                       k, stride, tile_h, wo, ho):
    """Pass 1: conv tile (bf16 output) + per-tile partial BN statistics."""
    acc = _conv_tile(x_ref, w_ref, k=k, stride=stride, tile_h=tile_h, wo=wo)
    y_ref[...] = acc.astype(y_ref.dtype)

    if ho % tile_h != 0:
        # Only the last row-tile is ragged; interior tiles skip the masking.
        t = pl.program_id(1)
        last = pl.num_programs(1) - 1

        @pl.when(t == last)
        def _():
            idx = jax.lax.broadcasted_iota(jnp.int32, (tile_h * wo, 1), 0)
            valid = (idx < (ho - t * tile_h) * wo).astype(jnp.float32)
            av = acc * valid
            sum_ref[...] = jnp.sum(av, axis=0, keepdims=True)
            sumsq_ref[...] = jnp.sum(av * acc, axis=0, keepdims=True)

        @pl.when(t != last)
        def _():
            sum_ref[...] = jnp.sum(acc, axis=0, keepdims=True)
            sumsq_ref[...] = jnp.sum(acc * acc, axis=0, keepdims=True)
    else:
        sum_ref[...] = jnp.sum(acc, axis=0, keepdims=True)
        sumsq_ref[...] = jnp.sum(acc * acc, axis=0, keepdims=True)


def _apply_kernel(y_ref, scale_ref, shift_ref, out_ref):
    """Pass 2: pure elementwise folded BN affine over the stored conv tile."""
    y = y_ref[...].astype(jnp.float32)
    out_ref[...] = (y * scale_ref[...] + shift_ref[...]).astype(out_ref.dtype)


def conv_patch_embed(x, weight, bias, gamma, beta, *,
                     stride=2, eps=1e-5, target_tile_rows=None):
    """x: (B, Cin, H, W) NCHW.  weight: (Cout, Cin, k, k).  Returns (y_nchw, (Ho, Wo))."""
    del bias  # cancelled exactly by the training-mode BN mean subtraction
    B, Cin, H, W = x.shape
    Cout, Cin_w, kh, kw = weight.shape
    assert Cin_w == Cin and kh == kw
    k, s = kh, stride
    pad = k // 2
    Ho = (H + 2 * pad - k) // s + 1
    Wo = (W + 2 * pad - k) // s + 1
    halo_h = (k - 1) // s                         # extra phase rows per tile
    kc = k * Cin                                  # packed contraction depth
    Cout_pad = -(-Cout // 128) * 128              # lane-dense output channels

    def _rt(n, m):
        return -(-n // m) * m

    def _need_bytes(th):
        rows = th * Wo
        l2 = (th + halo_h) * Wo
        x_blk = s * _rt(l2, 16) * _rt(kc, 128) * 2         # bf16 phase planes
        y_blk = _rt(rows, 16) * Cout_pad * 2               # bf16 conv tile
        o_blk = _rt(rows, 8) * Cout_pad * 4                # f32 output tile
        w_blk = k * _rt(kc, 16) * Cout_pad * 2             # bf16 weights
        stat_blk = 2 * 8 * Cout_pad * 4
        pass1 = 2 * (x_blk + y_blk + stat_blk) + 2 * w_blk
        pass2 = 2 * (y_blk + o_blk) + 4 * 8 * Cout_pad * 4
        return max(pass1, pass2) + (6 << 20)               # compute-scratch headroom

    # Generation-aware VMEM budget (128 MiB on v5e/v6e, 64 MiB per core on v7x).
    try:
        phys_vmem = int(getattr(pltpu.get_tpu_info(), "vmem_capacity_bytes", 64 << 20))
    except Exception:  # conservative fallback
        phys_vmem = 64 << 20
    vmem_cap = (phys_vmem * 3) // 4

    if target_tile_rows is None:
        target_tile_rows = 4096 if phys_vmem >= (96 << 20) else 2048
    tile_h = max(1, min(Ho, target_tile_rows // max(Wo, 1)))
    while tile_h > 1 and _need_bytes(tile_h) > vmem_cap:
        tile_h = max(1, tile_h // 2)
    # v7x megacore: keep >= 2 grid steps so both TensorCores get work.
    if B * (-(-Ho // tile_h)) < 2 and tile_h > 1:
        tile_h = -(-tile_h // 2)
    n_ht = -(-Ho // tile_h)
    rows = tile_h * Wo
    L2 = (tile_h + halo_h) * Wo
    vmem_limit = int(min(vmem_cap, max(32 << 20, _need_bytes(tile_h))))

    # ---------- host glue (~1.5x input bytes in bf16): row-phase planes with
    # the k column taps packed into the contraction (lane) dim ----------
    xb = jnp.transpose(x, (0, 2, 3, 1)).astype(jnp.bfloat16)       # (B, H, W, Cin)
    n_rows_phase = n_ht * tile_h + halo_h
    pad_bottom = max(0, s * n_rows_phase - (H + pad))
    xb = jnp.pad(xb, ((0, 0), (pad, pad_bottom), (pad, pad), (0, 0)))

    planes = []
    for r in range(s):                                             # row phase
        xr = xb[:, r::s, :, :][:, :n_rows_phase]                   # (B, nrp, Wp, Cin)
        cols = [xr[:, :, iw::s, :][:, :, :Wo, :] for iw in range(k)]
        xc = jnp.concatenate(cols, axis=-1)                        # (B, nrp, Wo, k*Cin)
        tiles = [xc[:, t * tile_h: t * tile_h + tile_h + halo_h]
                 for t in range(n_ht)]                             # overlapping row windows
        plane = jnp.stack(tiles, axis=1)                           # (B, n_ht, tile_h+halo, Wo, kCin)
        planes.append(plane.reshape(B * n_ht, L2, kc))
    x_taps = jnp.stack(planes, axis=0)                             # (s, B*n_ht, L2, k*Cin) bf16

    # Per-row-tap weights with column taps stacked along the contraction dim
    # (iw-major, Cin-minor) to match the plane packing; Cout zero-padded to 128.
    w_taps = jnp.transpose(weight, (2, 3, 1, 0)).reshape(k, kc, Cout)
    w_taps = jnp.pad(w_taps, ((0, 0), (0, 0), (0, Cout_pad - Cout))).astype(jnp.bfloat16)

    # ---------- specs ----------
    x_spec = pl.BlockSpec((s, None, L2, kc), lambda b, t: (0, b * n_ht + t, 0, 0))
    w_spec = pl.BlockSpec((k, kc, Cout_pad), lambda b, t: (0, 0, 0))
    y_spec = pl.BlockSpec((None, rows, Cout_pad), lambda b, t: (b * n_ht + t, 0, 0))
    stat_spec = pl.BlockSpec((None, 1, Cout_pad), lambda b, t: (b * n_ht + t, 0, 0))
    vec_spec = pl.BlockSpec((1, Cout_pad), lambda b, t: (0, 0))

    cparams = pltpu.CompilerParams(
        dimension_semantics=("parallel", "parallel"),
        vmem_limit_bytes=vmem_limit)

    # ---------- pass 1: conv (bf16 intermediate) + partial BN stats ----------
    stats_kernel = functools.partial(
        _conv_stats_kernel, k=k, stride=s, tile_h=tile_h, wo=Wo, ho=Ho)
    y_conv, sums, sumsqs = pl.pallas_call(
        stats_kernel,
        grid=(B, n_ht),
        out_shape=(jax.ShapeDtypeStruct((B * n_ht, rows, Cout_pad), jnp.bfloat16),
                   jax.ShapeDtypeStruct((B * n_ht, 1, Cout_pad), jnp.float32),
                   jax.ShapeDtypeStruct((B * n_ht, 1, Cout_pad), jnp.float32)),
        in_specs=[x_spec, w_spec],
        out_specs=(y_spec, stat_spec, stat_spec),
        compiler_params=cparams,
    )(x_taps, w_taps)

    # ---------- tiny host reduction + scale/shift folding ----------
    # TODO(synk): E[x^2]-E[x]^2 in f32 can cancel for very large B*Ho*Wo with
    # |mean| >> std; a shifted/compensated partial-sum scheme would be safer.
    n = float(B * Ho * Wo)
    mean = jnp.sum(sums, axis=(0, 1)) / n                          # (Cout_pad,)
    var = jnp.maximum(jnp.sum(sumsqs, axis=(0, 1)) / n - mean * mean, 0.0)
    inv = jax.lax.rsqrt(var + eps)
    gamma_p = jnp.pad(gamma.astype(jnp.float32), (0, Cout_pad - Cout))
    beta_p = jnp.pad(beta.astype(jnp.float32), (0, Cout_pad - Cout))
    scale = (gamma_p * inv).reshape(1, Cout_pad)
    shift = (beta_p - mean * gamma_p * inv).reshape(1, Cout_pad)

    # ---------- pass 2: elementwise folded BN affine (no conv recompute) ----------
    out = pl.pallas_call(
        _apply_kernel,
        grid=(B, n_ht),
        out_shape=jax.ShapeDtypeStruct((B * n_ht, rows, Cout_pad), x.dtype),
        in_specs=[y_spec, vec_spec, vec_spec],
        out_specs=y_spec,
        compiler_params=cparams,
    )(y_conv, scale, shift)

    # Drop ragged rows / padded channels and return NCHW to match the module.
    # TODO(synk): the final NHWC->NCHW transpose is an extra HBM pass; keep
    # channels-last end-to-end if the surrounding model allows it.
    y = out.reshape(B, n_ht * tile_h, Wo, Cout_pad)[:, :Ho, :, :Cout]
    y_nchw = jnp.transpose(y, (0, 3, 1, 2))                        # (B, Cout, Ho, Wo)
    return y_nchw, (Ho, Wo)


def _reference(x, weight, bias, gamma, beta, *, stride, eps):
    """Pure-JAX Conv2d + training-mode BatchNorm2d (conv inputs in bf16 like the kernel)."""
    pad = weight.shape[2] // 2
    y = jax.lax.conv_general_dilated(
        x.astype(jnp.bfloat16), weight.astype(jnp.bfloat16),
        window_strides=(stride, stride),
        padding=((pad, pad), (pad, pad)),
        dimension_numbers=("NCHW", "OIHW", "NCHW"),
        preferred_element_type=jnp.float32)
    y = y + bias[None, :, None, None]
    mean = jnp.mean(y, axis=(0, 2, 3), keepdims=True)
    var = jnp.mean((y - mean) ** 2, axis=(0, 2, 3), keepdims=True)
    y_hat = (y - mean) * jax.lax.rsqrt(var + eps)
    return y_hat * gamma[None, :, None, None] + beta[None, :, None, None]


if __name__ == "__main__":
    key = jax.random.PRNGKey(0)
    B, Cin, H, W = 2, 4, 16, 16
    embed_dims, ksize, stride = 32, 3, 2

    k1, k2, k3, k4, k5 = jax.random.split(key, 5)
    x = jax.random.normal(k1, (B, Cin, H, W), jnp.float32)
    fan_in = Cin * ksize * ksize
    weight = jax.random.normal(k2, (embed_dims, Cin, ksize, ksize),
                               jnp.float32) * (1.0 / fan_in) ** 0.5
    bias = jax.random.normal(k3, (embed_dims,), jnp.float32) * 0.1
    gamma = 1.0 + 0.1 * jax.random.normal(k4, (embed_dims,), jnp.float32)
    beta = 0.1 * jax.random.normal(k5, (embed_dims,), jnp.float32)

    # Small target_tile_rows so the tiny demo exercises the multi-tile grid and
    # the ragged-last-tile stats masking (production default is VMEM-derived).
    y, out_size = conv_patch_embed(x, weight, bias, gamma, beta,
                                   stride=stride, eps=1e-5, target_tile_rows=48)
    jax.block_until_ready(y)

    Ho, Wo = H // stride, W // stride
    assert y.shape == (B, embed_dims, Ho, Wo), y.shape
    assert out_size == (Ho, Wo), out_size

    ref = _reference(x, weight, bias, gamma, beta, stride=stride, eps=1e-5)
    max_err = float(jnp.max(jnp.abs(y - ref)))
    assert max_err < 5e-2, f"max abs error vs reference: {max_err}"
    print("KERNEL_OK")
</pallas_src>

<mosaic_0001>
module attributes {stable_mosaic.version = 11 : i64} {
  func.func @_conv_stats_kernel(%arg0: i32, %arg1: i32, %arg2: memref<2x1x56x12xbf16, #tpu.memory_space<vmem>>, %arg3: memref<3x12x128xbf16, #tpu.memory_space<vmem>>, %arg4: memref<1x48x128xbf16, #tpu.memory_space<vmem>>, %arg5: memref<1x1x128xf32, #tpu.memory_space<vmem>>, %arg6: memref<1x1x128xf32, #tpu.memory_space<vmem>>) attributes {dimension_semantics = [#tpu.dimension_semantics<parallel>, #tpu.dimension_semantics<parallel>], iteration_bounds = array<i64: 2, 2>, scalar_prefetch = 0 : i64, scratch_operands = 0 : i64, tpu.core_type = #tpu.core_type<tc>, window_params = [{transform_indices = @transform_0, window_bounds = array<i64: 2, 1, 56, 12>}, {pipeline_mode = #tpu.pipeline_mode<synchronous>, transform_indices = @transform_1, window_bounds = array<i64: 3, 12, 128>}, {transform_indices = @transform_2, window_bounds = array<i64: 1, 48, 128>}, {transform_indices = @transform_3, window_bounds = array<i64: 1, 1, 128>}, {transform_indices = @transform_4, window_bounds = array<i64: 1, 1, 128>}]} {
    %c0 = arith.constant 0 : index
    %c0_0 = arith.constant 0 : index
    %c0_1 = arith.constant 0 : index
    %c0_2 = arith.constant 0 : index
    %0 = vector.load %arg2[%c0, %c0_0, %c0_1, %c0_2] : memref<2x1x56x12xbf16, #tpu.memory_space<vmem>>, vector<1x1x48x12xbf16>
    %1 = vector.shape_cast %0 : vector<1x1x48x12xbf16> to vector<48x12xbf16>
    %c0_3 = arith.constant 0 : index
    %c0_4 = arith.constant 0 : index
    %c0_5 = arith.constant 0 : index
    %2 = vector.load %arg3[%c0_3, %c0_4, %c0_5] : memref<3x12x128xbf16, #tpu.memory_space<vmem>>, vector<1x12x128xbf16>
    %3 = vector.shape_cast %2 : vector<1x12x128xbf16> to vector<12x128xbf16>
    %cst = arith.constant dense<0.000000e+00> : vector<48x128xf32>
    %4 = tpu.matmul %1, %3, %cst {dimension_numbers = #tpu.dot_dimension_numbers<[1], [0], [0], [1], [0, 0, 1, 1], [], []>} : vector<48x12xbf16>, vector<12x128xbf16>, vector<48x128xf32> -> vector<48x128xf32>
    %c1 = arith.constant 1 : index
    %c0_6 = arith.constant 0 : index
    %c0_7 = arith.constant 0 : index
    %c0_8 = arith.constant 0 : index
    %5 = vector.load %arg2[%c1, %c0_6, %c0_7, %c0_8] : memref<2x1x56x12xbf16, #tpu.memory_space<vmem>>, vector<1x1x48x12xbf16>
    %6 = vector.shape_cast %5 : vector<1x1x48x12xbf16> to vector<48x12xbf16>
    %c1_9 = arith.constant 1 : index
    %c0_10 = arith.constant 0 : index
    %c0_11 = arith.constant 0 : index
    %7 = vector.load %arg3[%c1_9, %c0_10, %c0_11] : memref<3x12x128xbf16, #tpu.memory_space<vmem>>, vector<1x12x128xbf16>
    %8 = vector.shape_cast %7 : vector<1x12x128xbf16> to vector<12x128xbf16>
    %cst_12 = arith.constant dense<0.000000e+00> : vector<48x128xf32>
    %9 = tpu.matmul %6, %8, %cst_12 {dimension_numbers = #tpu.dot_dimension_numbers<[1], [0], [0], [1], [0, 0, 1, 1], [], []>} : vector<48x12xbf16>, vector<12x128xbf16>, vector<48x128xf32> -> vector<48x128xf32>
    %10 = arith.addf %4, %9 : vector<48x128xf32>
    %c0_13 = arith.constant 0 : index
    %c0_14 = arith.constant 0 : index
    %c8 = arith.constant 8 : index
    %c0_15 = arith.constant 0 : index
    %11 = vector.load %arg2[%c0_13, %c0_14, %c8, %c0_15] : memref<2x1x56x12xbf16, #tpu.memory_space<vmem>>, vector<1x1x48x12xbf16>
    %12 = vector.shape_cast %11 : vector<1x1x48x12xbf16> to vector<48x12xbf16>
    %c2 = arith.constant 2 : index
    %c0_16 = arith.constant 0 : index
    %c0_17 = arith.constant 0 : index
    %13 = vector.load %arg3[%c2, %c0_16, %c0_17] : memref<3x12x128xbf16, #tpu.memory_space<vmem>>, vector<1x12x128xbf16>
    %14 = vector.shape_cast %13 : vector<1x12x128xbf16> to vector<12x128xbf16>
    %cst_18 = arith.constant dense<0.000000e+00> : vector<48x128xf32>
    %15 = tpu.matmul %12, %14, %cst_18 {dimension_numbers = #tpu.dot_dimension_numbers<[1], [0], [0], [1], [0, 0, 1, 1], [], []>} : vector<48x12xbf16>, vector<12x128xbf16>, vector<48x128xf32> -> vector<48x128xf32>
    %16 = arith.addf %10, %15 : vector<48x128xf32>
    %17 = arith.truncf %16 : vector<48x128xf32> to vector<48x128xbf16>
    %c0_19 = arith.constant 0 : index
    %c0_20 = arith.constant 0 : index
    %c0_21 = arith.constant 0 : index
    %18 = vector.load %arg4[%c0_19, %c0_20, %c0_21] : memref<1x48x128xbf16, #tpu.memory_space<vmem>>, vector<1x48x128xbf16>
    %19 = vector.shape_cast %18 : vector<1x48x128xbf16> to vector<48x128xbf16>
    %20 = vector.shape_cast %17 : vector<48x128xbf16> to vector<1x48x128xbf16>
    tpu.vector_store %arg4[%c0_19, %c0_20, %c0_21], %20 {strides = array<i32>} : memref<1x48x128xbf16, #tpu.memory_space<vmem>>, vector<1x48x128xbf16>,
    %c1_i32 = arith.constant 1 : i32
    %21 = arith.cmpi eq, %arg1, %c1_i32 : i32
    %22 = arith.extui %21 : i1 to i32
    %c0_i32 = arith.constant 0 : i32
    %23 = arith.cmpi ne, %22, %c0_i32 : i32
    scf.if %23 {
      %27 = tpu.iota {dimensions = array<i32: 0>} : vector<48x1xi32>
      %c6_i32 = arith.constant 6 : i32
      %28 = arith.muli %arg1, %c6_i32 : i32
      %c8_i32 = arith.constant 8 : i32
      %29 = arith.subi %c8_i32, %28 : i32
      %c8_i32_24 = arith.constant 8 : i32
      %30 = arith.muli %29, %c8_i32_24 : i32
      %31 = vector.broadcast %30 : i32 to vector<48x1xi32>
      %32 = arith.cmpi slt, %27, %31 : vector<48x1xi32>
      %33 = arith.extui %32 : vector<48x1xi1> to vector<48x1xi32>
      %34 = arith.sitofp %33 : vector<48x1xi32> to vector<48x1xf32>
      %35 = vector.broadcast %34 : vector<48x1xf32> to vector<48x128xf32>
      %36 = arith.mulf %16, %35 : vector<48x128xf32>
      %cst_25 = arith.constant dense<0.000000e+00> : vector<128xf32>
      %37 = vector.multi_reduction <add>, %36, %cst_25 [0] : vector<48x128xf32> to vector<128xf32>
      %38 = vector.shape_cast %37 : vector<128xf32> to vector<1x128xf32>
      %c0_26 = arith.constant 0 : index
      %c0_27 = arith.constant 0 : index
      %c0_28 = arith.constant 0 : index
      %39 = vector.load %arg5[%c0_26, %c0_27, %c0_28] : memref<1x1x128xf32, #tpu.memory_space<vmem>>, vector<1x1x128xf32>
      %40 = vector.shape_cast %39 : vector<1x1x128xf32> to vector<1x128xf32>
      %41 = vector.shape_cast %38 : vector<1x128xf32> to vector<1x1x128xf32>
      tpu.vector_store %arg5[%c0_26, %c0_27, %c0_28], %41 {strides = array<i32>} : memref<1x1x128xf32, #tpu.memory_space<vmem>>, vector<1x1x128xf32>,
      %42 = arith.mulf %36, %16 : vector<48x128xf32>
      %cst_29 = arith.constant dense<0.000000e+00> : vector<128xf32>
      %43 = vector.multi_reduction <add>, %42, %cst_29 [0] : vector<48x128xf32> to vector<128xf32>
      %44 = vector.shape_cast %43 : vector<128xf32> to vector<1x128xf32>
      %c0_30 = arith.constant 0 : index
      %c0_31 = arith.constant 0 : index
      %c0_32 = arith.constant 0 : index
      %45 = vector.load %arg6[%c0_30, %c0_31, %c0_32] : memref<1x1x128xf32, #tpu.memory_space<vmem>>, vector<1x1x128xf32>
      %46 = vector.shape_cast %45 : vector<1x1x128xf32> to vector<1x128xf32>
      %47 = vector.shape_cast %44 : vector<1x128xf32> to vector<1x1x128xf32>
      tpu.vector_store %arg6[%c0_30, %c0_31, %c0_32], %47 {strides = array<i32>} : memref<1x1x128xf32, #tpu.memory_space<vmem>>, vector<1x1x128xf32>,
    } else {
    }
    %c1_i32_22 = arith.constant 1 : i32
    %24 = arith.cmpi ne, %arg1, %c1_i32_22 : i32
    %25 = arith.extui %24 : i1 to i32
    %c0_i32_23 = arith.constant 0 : i32
    %26 = arith.cmpi ne, %25, %c0_i32_23 : i32
    scf.if %26 {
      %cst_24 = arith.constant dense<0.000000e+00> : vector<128xf32>
      %27 = vector.multi_reduction <add>, %16, %cst_24 [0] : vector<48x128xf32> to vector<128xf32>
      %28 = vector.shape_cast %27 : vector<128xf32> to vector<1x128xf32>
      %c0_25 = arith.constant 0 : index
      %c0_26 = arith.constant 0 : index
      %c0_27 = arith.constant 0 : index
      %29 = vector.load %arg5[%c0_25, %c0_26, %c0_27] : memref<1x1x128xf32, #tpu.memory_space<vmem>>, vector<1x1x128xf32>
      %30 = vector.shape_cast %29 : vector<1x1x128xf32> to vector<1x128xf32>
      %31 = vector.shape_cast %28 : vector<1x128xf32> to vector<1x1x128xf32>
      tpu.vector_store %arg5[%c0_25, %c0_26, %c0_27], %31 {strides = array<i32>} : memref<1x1x128xf32, #tpu.memory_space<vmem>>, vector<1x1x128xf32>,
      %32 = arith.mulf %16, %16 : vector<48x128xf32>
      %cst_28 = arith.constant dense<0.000000e+00> : vector<128xf32>
      %33 = vector.multi_reduction <add>, %32, %cst_28 [0] : vector<48x128xf32> to vector<128xf32>
      %34 = vector.shape_cast %33 : vector<128xf32> to vector<1x128xf32>
      %c0_29 = arith.constant 0 : index
      %c0_30 = arith.constant 0 : index
      %c0_31 = arith.constant 0 : index
      %35 = vector.load %arg6[%c0_29, %c0_30, %c0_31] : memref<1x1x128xf32, #tpu.memory_space<vmem>>, vector<1x1x128xf32>
      %36 = vector.shape_cast %35 : vector<1x1x128xf32> to vector<1x128xf32>
      %37 = vector.shape_cast %34 : vector<1x128xf32> to vector<1x1x128xf32>
      tpu.vector_store %arg6[%c0_29, %c0_30, %c0_31], %37 {strides = array<i32>} : memref<1x1x128xf32, #tpu.memory_space<vmem>>, vector<1x1x128xf32>,
    } else {
    }
    return
  }
  func.func @transform_0(%arg0: i32, %arg1: i32) -> (i32, i32, i32, i32) {
    %c2_i32 = arith.constant 2 : i32
    %0 = arith.muli %arg0, %c2_i32 : i32
    %1 = arith.addi %0, %arg1 : i32
    %c0_i32 = arith.constant 0 : i32
    %c0_i32_0 = arith.constant 0 : i32
    %c0_i32_1 = arith.constant 0 : i32
    %c0_i32_2 = arith.constant 0 : i32
    return %c0_i32, %1, %c0_i32_0, %c0_i32_1 : i32, i32, i32, i32
  }
  func.func @transform_1(%arg0: i32, %arg1: i32) -> (i32, i32, i32) {
    %c0_i32 = arith.constant 0 : i32
    %c0_i32_0 = arith.constant 0 : i32
    %c0_i32_1 = arith.constant 0 : i32
    %c0_i32_2 = arith.constant 0 : i32
    return %c0_i32, %c0_i32_0, %c0_i32_1 : i32, i32, i32
  }
  func.func @transform_2(%arg0: i32, %arg1: i32) -> (i32, i32, i32) {
    %c2_i32 = arith.constant 2 : i32
    %0 = arith.muli %arg0, %c2_i32 : i32
    %1 = arith.addi %0, %arg1 : i32
    %c0_i32 = arith.constant 0 : i32
    %c0_i32_0 = arith.constant 0 : i32
    %c0_i32_1 = arith.constant 0 : i32
    return %1, %c0_i32, %c0_i32_0 : i32, i32, i32
  }
  func.func @transform_3(%arg0: i32, %arg1: i32) -> (i32, i32, i32) {
    %c2_i32 = arith.constant 2 : i32
    %0 = arith.muli %arg0, %c2_i32 : i32
    %1 = arith.addi %0, %arg1 : i32
    %c0_i32 = arith.constant 0 : i32
    %c0_i32_0 = arith.constant 0 : i32
    %c0_i32_1 = arith.constant 0 : i32
    return %1, %c0_i32, %c0_i32_0 : i32, i32, i32
  }
  func.func @transform_4(%arg0: i32, %arg1: i32) -> (i32, i32, i32) {
    %c2_i32 = arith.constant 2 : i32
    %0 = arith.muli %arg0, %c2_i32 : i32
    %1 = arith.addi %0, %arg1 : i32
    %c0_i32 = arith.constant 0 : i32
    %c0_i32_0 = arith.constant 0 : i32
    %c0_i32_1 = arith.constant 0 : i32
    return %1, %c0_i32, %c0_i32_0 : i32, i32, i32
  }
}

</mosaic_0001>

<llo_original>
// kernel: tpu_custom_call.1
$region0: #{tpu_custom_call.1}
  #allocation0 [shape = 'u32[]', space=smem, size = 0x4, offset = 0x4, fixed_abs, tag = 'smem constant byte address 0x4 - core index']
  #allocation1 [shape = 'u32[144,128]{1,0:T(1,128)}', space=vmem, size = 0x12000, scoped, tag = 'internal scratch']
  %s0 = inlined_call_operand.vmem [shape: bf16[2,4,56,12], index: 0, kind: input, shape index: {}]
  %s1 = inlined_call_operand.vmem [shape: bf16[3,12,128], index: 1, kind: input, shape index: {}]
  %s2 = inlined_call_operand.hbm [shape: bf16[4,48,128], index: 2, kind: output, shape index: {0}]
  %s3 = inlined_call_operand.hbm [shape: f32[4,1,128], index: 3, kind: output, shape index: {1}]
  %s4 = inlined_call_operand.hbm [shape: f32[4,1,128], index: 4, kind: output, shape index: {2}]
  %5 = xla_tuple %s2, %s3, %s4
  %s6 = sld [smem:[#allocation0]]
  $region106: #{tpu_custom_call.1} parent=0
    _
  %s8 = ssub.s32 1, %s6
  %s9 = scalar_select 0, %s8, %s6
  $region1: #{tpu_custom_call.1} parent=0
    #allocation2 [shape = 'u8[57344]{0}', space=vmem, size = 0xe000, scoped, tag = 'input window, operand 0']
    #allocation3 [shape = 'u8[24576]{0}', space=vmem, size = 0x6000, scoped, tag = 'output window, operand 0']
    #allocation4 [shape = 's32[2]{0}', space=sflag, size = 0x8, scoped, tag = 'scoped memory for tpu_custom_call.1']
    #allocation5 [shape = 'u8[1024]{0}', space=vmem, size = 0x400, scoped, tag = 'output window, operand 1']
    #allocation6 [shape = 's32[2]{0}', space=sflag, size = 0x8, scoped, tag = 'scoped memory for tpu_custom_call.1']
    #allocation7 [shape = 'u8[1024]{0}', space=vmem, size = 0x400, scoped, tag = 'output window, operand 2']
    %10 = vsyncpa [#allocation4], 0
    %s11 = scalar_lea.sflag [#allocation4], 1
    %12 = vsyncpa %s11, 0
    %13 = vsyncpa [#allocation6], 0
    %s14 = scalar_lea.sflag [#allocation6], 1
    %15 = vsyncpa %s14, 0
    loop: start=0, step=1, limit=6
    $region2: #{tpu_custom_call.1} parent=1 // loop_pre_header
      _
    $region3: #{tpu_custom_call.1} parent=1 // loop_header
      %s17 = sphi 0, %s21
      %p18 = scmp.ge.s32.totalorder %s17, 6
      %s24 = sphi 0, %s36
      %s25 = sphi 0, %s32
      %s26 = sphi 0, %s24
      %s27 = sphi 0, %s25
      %s28 = sphi 0, %s26
      %s29 = sphi 0, %s27
      %s43 = sphi 0, %s45
      %s46 = sphi 0, %s43
      %s47 = sphi 0, %s46
      %s63 = sphi 0, %s47
      %s67 = sphi 0, %s67
      %s69 = sphi 0, %s67
      %s70 = sphi 0, %s69
      %s84 = sphi 0, %s70
      %s94 = sphi 0, %s96
      %s97 = sphi 0, %s94
      %s98 = sphi 0, %s97
      %s114 = sphi 0, %s98
      %s124 = sphi 0, %s126
      %s127 = sphi 0, %s124
      %s128 = sphi 0, %s127
      %s144 = sphi 0, %s128
      %s154 = sphi 0, %s156
      %s157 = sphi 0, %s154
      %s158 = sphi 0, %s157
      %s174 = sphi 0, %s158
    $region4: #{tpu_custom_call.1} parent=1 // loop_header_branch
      %20 = sbr.rel (%p18) target = $region8
    $region5: #{tpu_custom_call.1} parent=1 // loop_body
      %s22 = ssub.s32 %s17, 1
      %s23 = ssub.s32 %s17, 2
      %s30 = sadd.s32 1, %s25
      %p31 = scmp.ge.s32.totalorder %s30, 2
      %s32 = scalar_select %p31, 0, %s30
      %s33 = sadd.s32 1, %s24
      %s34 = scalar_select %p31, %s33, %s24
      %p35 = scmp.ge.s32.totalorder %s34, 2
      %s36 = scalar_select %p35, 0, %s34
      %s37 = smul.u32 %s24, 2
      %s38 = sadd.s32 %s37, %s25
      %s39 = smul.u32 %s36, 2
      %s40 = sadd.s32 %s39, %s32
      %s41 = ssub.s32 %s38, %s40
      %p42 = scmp.eq.s32.totalorder %s41, 0
      %s44 = sadd.s32 %s43, 1
      %s45 = scalar_select %p42, %s43, %s44
      %p48 = pneg %p42
      %p49 = scmp.eq.s32.totalorder %s17, 3
      %p50 = por %p48, %p49
      %p51 = scmp.ne.s32.totalorder %s43, %s46
      %p52 = scmp.eq.s32.totalorder %s17, 0
      %p53 = por %p51, %p52
      %p54 = scmp.ne.s32.totalorder %s43, %s46
      %p55 = scmp.eq.s32.totalorder %s22, 3
      %p56 = por %p54, %p55
      %p57 = scmp.ne.s32.totalorder %s46, %s47
      %p58 = scmp.eq.s32.totalorder %s22, 0
      %p59 = por %p57, %p58
      %p60 = scmp.ne.s32.totalorder %s46, %s47
      %p61 = scmp.eq.s32.totalorder %s23, 3
      %p62 = por %p60, %p61
      %p64 = scmp.ne.s32.totalorder %s47, %s63
      %p65 = scmp.eq.s32.totalorder %s23, 0
      %p66 = por %p64, %p65
      %s68 = sadd.s32 %s67, 1
      %p71 = scmp.eq.s32.totalorder %s17, 3
      %p72 = scmp.ne.s32.totalorder %s67, %s69
      %p73 = scmp.eq.s32.totalorder %s17, 0
      %p74 = por %p72, %p73
      %p75 = scmp.ne.s32.totalorder %s67, %s69
      %p76 = scmp.eq.s32.totalorder %s22, 3
      %p77 = por %p75, %p76
      %p78 = scmp.ne.s32.totalorder %s69, %s70
      %p79 = scmp.eq.s32.totalorder %s22, 0
      %p80 = por %p78, %p79
      %p81 = scmp.ne.s32.totalorder %s69, %s70
      %p82 = scmp.eq.s32.totalorder %s23, 3
      %p83 = por %p81, %p82
      %p85 = scmp.ne.s32.totalorder %s70, %s84
      %p86 = scmp.eq.s32.totalorder %s23, 0
      %p87 = por %p85, %p86
      %s88 = smul.u32 %s24, 2
      %s89 = sadd.s32 %s88, %s25
      %s90 = smul.u32 %s36, 2
      %s91 = sadd.s32 %s90, %s32
      %s92 = ssub.s32 %s89, %s91
      %p93 = scmp.eq.s32.totalorder %s92, 0
      %s95 = sadd.s32 %s94, 1
      %s96 = scalar_select %p93, %s94, %s95
      %p99 = pneg %p93
      %p100 = scmp.eq.s32.totalorder %s17, 3
      %p101 = por %p99, %p100
      %p102 = scmp.ne.s32.totalorder %s94, %s97
      %p103 = scmp.eq.s32.totalorder %s17, 0
      %p104 = por %p102, %p103
      %p105 = scmp.ne.s32.totalorder %s94, %s97
      %p106 = scmp.eq.s32.totalorder %s22, 3
      %p107 = por %p105, %p106
      %p108 = scmp.ne.s32.totalorder %s97, %s98
      %p109 = scmp.eq.s32.totalorder %s22, 0
      %p110 = por %p108, %p109
      %p111 = scmp.ne.s32.totalorder %s97, %s98
      %p112 = scmp.eq.s32.totalorder %s23, 3
      %p113 = por %p111, %p112
      %p115 = scmp.ne.s32.totalorder %s98, %s114
      %p116 = scmp.eq.s32.totalorder %s23, 0
      %p117 = por %p115, %p116
      %s118 = smul.u32 %s24, 2
      %s119 = sadd.s32 %s118, %s25
      %s120 = smul.u32 %s36, 2
      %s121 = sadd.s32 %s120, %s32
      %s122 = ssub.s32 %s119, %s121
      %p123 = scmp.eq.s32.totalorder %s122, 0
      %s125 = sadd.s32 %s124, 1
      %s126 = scalar_select %p123, %s124, %s125
      %p129 = pneg %p123
      %p130 = scmp.eq.s32.totalorder %s17, 3
      %p131 = por %p129, %p130
      %p132 = scmp.ne.s32.totalorder %s124, %s127
      %p133 = scmp.eq.s32.totalorder %s17, 0
      %p134 = por %p132, %p133
      %p135 = scmp.ne.s32.totalorder %s124, %s127
      %p136 = scmp.eq.s32.totalorder %s22, 3
      %p137 = por %p135, %p136
      %p138 = scmp.ne.s32.totalorder %s127, %s128
      %p139 = scmp.eq.s32.totalorder %s22, 0
      %p140 = por %p138, %p139
      %p141 = scmp.ne.s32.totalorder %s127, %s128
      %p142 = scmp.eq.s32.totalorder %s23, 3
      %p143 = por %p141, %p142
      %p145 = scmp.ne.s32.totalorder %s128, %s144
      %p146 = scmp.eq.s32.totalorder %s23, 0
      %p147 = por %p145, %p146
      %s148 = smul.u32 %s24, 2
      %s149 = sadd.s32 %s148, %s25
      %s150 = smul.u32 %s36, 2
      %s151 = sadd.s32 %s150, %s32
      %s152 = ssub.s32 %s149, %s151
      %p153 = scmp.eq.s32.totalorder %s152, 0
      %s155 = sadd.s32 %s154, 1
      %s156 = scalar_select %p153, %s154, %s155
      %p159 = pneg %p153
      %p160 = scmp.eq.s32.totalorder %s17, 3
      %p161 = por %p159, %p160
      %p162 = scmp.ne.s32.totalorder %s154, %s157
      %p163 = scmp.eq.s32.totalorder %s17, 0
      %p164 = por %p162, %p163
      %p165 = scmp.ne.s32.totalorder %s154, %s157
      %p166 = scmp.eq.s32.totalorder %s22, 3
      %p167 = por %p165, %p166
      %p168 = scmp.ne.s32.totalorder %s157, %s158
      %p169 = scmp.eq.s32.totalorder %s22, 0
      %p170 = por %p168, %p169
      %p171 = scmp.ne.s32.totalorder %s157, %s158
      %p172 = scmp.eq.s32.totalorder %s23, 3
      %p173 = por %p171, %p172
      %p175 = scmp.ne.s32.totalorder %s158, %s174
      %p176 = scmp.eq.s32.totalorder %s23, 0
      %p177 = por %p175, %p176
      %p178 = scmp.le.s32.totalorder 1, %s17
      %p179 = scmp.lt.s32.totalorder %s17, 5
      %p180 = pnand %p178, %p179
      %p181 = pneg %p180
      // Predicated region
      $region9: #{tpu_custom_call.1} parent=5 // pred_check
        _
      $region10: #{tpu_custom_call.1} parent=5 // pred_check_branch
        %183 = sbr.rel (%p180) target = $region12
      $region11: #{tpu_custom_call.1} parent=5 // pred_region
        %s184 = ssub.s32 %s17, 1
        // Predicated region
        $region13: #{tpu_custom_call.1} parent=11 // pred_check
          %p185 = pneg %p80
        $region14: #{tpu_custom_call.1} parent=11 // pred_check_branch
          %187 = sbr.rel (%p185) target = $region16
        $region15: #{tpu_custom_call.1} parent=11 // pred_region
          _
        $region16: #{tpu_custom_call.1} parent=11 // pred_fallthru
          _
      $region12: #{tpu_custom_call.1} parent=5 // pred_fallthru
        _
      %p188 = scmp.lt.s32.totalorder %s17, 4
      // Predicated region
      $region17: #{tpu_custom_call.1} parent=5 // pred_check
        %p189 = pneg %p188
      $region18: #{tpu_custom_call.1} parent=5 // pred_check_branch
        %191 = sbr.rel (%p189) target = $region20
      $region19: #{tpu_custom_call.1} parent=5 // pred_region
        // Predicated region
        $region21: #{tpu_custom_call.1} parent=19 // pred_check
          %p192 = pneg %p53
        $region22: #{tpu_custom_call.1} parent=19 // pred_check_branch
          %194 = sbr.rel (%p192) target = $region24
        $region23: #{tpu_custom_call.1} parent=19 // pred_region
          %s195 = sand.u32 %s43, 1
          %s196 = sand.u32 %s43, 1
          %s197 = smul.addr %s196, 56
          %s198 = scalar_lea.vmem [#allocation2], %s197
          %s199 = smul.u32 %s24, 2
          %s200 = sadd.s32 %s199, %s25
          %s201 = smul.addr %s200, 7
          %s202 = smul.addr %s201, 4
          %s203 = scalar_lea.vmem %s0, %s202
          // Predicated region
          $region25: #{tpu_custom_call.1} parent=23 // pred_check
            _
          $region26: #{tpu_custom_call.1} parent=23 // pred_check_branch
            %205 = sbr.rel (0) target = $region28
          $region27: #{tpu_custom_call.1} parent=23 // pred_region
            // Predicated region
            $region29: #{tpu_custom_call.1} parent=27 // pred_check
              _
            $region30: #{tpu_custom_call.1} parent=27 // pred_check_branch
              %207 = sbr.rel target = $region32
            $region31: #{tpu_custom_call.1} parent=27 // pred_region
              // Predicated region
              $region44: #{tpu_custom_call.1} parent=31 // pred_check
                _
              $region45: #{tpu_custom_call.1} parent=31 // pred_check_branch
                %248 = sbr.rel (0) target = $region47
              $region46: #{tpu_custom_call.1} parent=31 // pred_region
                loop: start=0, step=1, limit=1
                $region48: #{tpu_custom_call.1} parent=46 // loop_pre_header
                  _
                $region49: #{tpu_custom_call.1} parent=46 // loop_header
                  %s250 = sphi 0, %s254
                  %p251 = scmp.ge.s32.totalorder %s250, 1
                  %s255 = sphi %s203, %s203
                  %s256 = sphi %s198, %s198
                $region50: #{tpu_custom_call.1} parent=46 // loop_header_branch
                  %253 = sbr.rel (%p251) target = $region54
                $region51: #{tpu_custom_call.1} parent=46 // loop_body
                  _
                $region52: #{tpu_custom_call.1} parent=46 // loop_footer
                  %s254 = sadd.s32 1, %s250
                $region53: #{tpu_custom_call.1} parent=46 // loop_footer_branch
                  %249 = sbr.rel target = $region49
                $region54: #{tpu_custom_call.1} parent=46 // loop_exit
                  _
                loop: start=0, step=1, limit=1
                $region55: #{tpu_custom_call.1} parent=46 // loop_pre_header
                  _
                $region56: #{tpu_custom_call.1} parent=46 // loop_header
                  %s259 = sphi 0, %s263
                  %p260 = scmp.ge.s32.totalorder %s259, 1
                  %s264 = sphi %s203, %s203
                  %s265 = sphi %s198, %s198
                $region57: #{tpu_custom_call.1} parent=46 // loop_header_branch
                  %262 = sbr.rel (%p260) target = $region61
                $region58: #{tpu_custom_call.1} parent=46 // loop_body
                  %v266 = vld [vmem:[%s264] sm:$0xf]
                  %267 = vst [vmem:[%s265] sm:$0xf] %v266
                  %v268 = vld [vmem:[%s264 + $0x4] sm:$0xf]
                  %269 = vst [vmem:[%s265 + $0x4] sm:$0xf] %v268
                  %v270 = vld [vmem:[%s264 + $0x8] sm:$0xf]
                  %271 = vst [vmem:[%s265 + $0x8] sm:$0xf] %v270
                  %v272 = vld [vmem:[%s264 + $0xc] sm:$0xf]
                  %273 = vst [vmem:[%s265 + $0xc] sm:$0xf] %v272
                  %v274 = vld [vmem:[%s264 + $0x10] sm:$0xf]
                  %275 = vst [vmem:[%s265 + $0x10] sm:$0xf] %v274
                  %v276 = vld [vmem:[%s264 + $0x14] sm:$0xf]
                  %277 = vst [vmem:[%s265 + $0x14] sm:$0xf] %v276
                  %v278 = vld [vmem:[%s264 + $0x18] sm:$0xf]
                  %279 = vst [vmem:[%s265 + $0x18] sm:$0xf] %v278
                  %v280 = vld [vmem:[%s264 + $0x70] sm:$0xf]
                  %281 = vst [vmem:[%s265 + $0x1c] sm:$0xf] %v280
                  %v282 = vld [vmem:[%s264 + $0x74] sm:$0xf]
                  %283 = vst [vmem:[%s265 + $0x20] sm:$0xf] %v282
                  %v284 = vld [vmem:[%s264 + $0x78] sm:$0xf]
                  %285 = vst [vmem:[%s265 + $0x24] sm:$0xf] %v284
                  %v286 = vld [vmem:[%s264 + $0x7c] sm:$0xf]
                  %287 = vst [vmem:[%s265 + $0x28] sm:$0xf] %v286
                  %v288 = vld [vmem:[%s264 + $0x80] sm:$0xf]
                  %289 = vst [vmem:[%s265 + $0x2c] sm:$0xf] %v288
                  %v290 = vld [vmem:[%s264 + $0x84] sm:$0xf]
                  %291 = vst [vmem:[%s265 + $0x30] sm:$0xf] %v290
                  %v292 = vld [vmem:[%s264 + $0x88] sm:$0xf]
                  %293 = vst [vmem:[%s265 + $0x34] sm:$0xf] %v292
                $region59: #{tpu_custom_call.1} parent=46 // loop_footer
                  %s263 = sadd.s32 1, %s259
                $region60: #{tpu_custom_call.1} parent=46 // loop_footer_branch
                  %258 = sbr.rel target = $region56
                $region61: #{tpu_custom_call.1} parent=46 // loop_exit
                  _
              $region47: #{tpu_custom_call.1} parent=31 // pred_fallthru
                _
            $region32: #{tpu_custom_call.1} parent=27 // pred_fallthru
              _
            // Predicated region
            $region33: #{tpu_custom_call.1} parent=27 // pred_check
              _
            $region34: #{tpu_custom_call.1} parent=27 // pred_check_branch
              %209 = sbr.rel (0) target = $region36
            $region35: #{tpu_custom_call.1} parent=27 // pred_region
              loop: start=0, step=1, limit=1
              $region37: #{tpu_custom_call.1} parent=35 // loop_pre_header
                _
              $region38: #{tpu_custom_call.1} parent=35 // loop_header
                %s212 = sphi 0, %s216
                %p213 = scmp.ge.s32.totalorder %s212, 1
                %s217 = sphi %s203, %s203
                %s218 = sphi %s198, %s198
              $region39: #{tpu_custom_call.1} parent=35 // loop_header_branch
                %215 = sbr.rel (%p213) target = $region43
              $region40: #{tpu_custom_call.1} parent=35 // loop_body
                %v219 = vld [vmem:[%s217] sm:$0xf]
                %220 = vst [vmem:[%s218] sm:$0xf] %v219
                %v221 = vld [vmem:[%s217 + $0x4] sm:$0xf]
                %222 = vst [vmem:[%s218 + $0x4] sm:$0xf] %v221
                %v223 = vld [vmem:[%s217 + $0x8] sm:$0xf]
                %224 = vst [vmem:[%s218 + $0x8] sm:$0xf] %v223
                %v225 = vld [vmem:[%s217 + $0xc] sm:$0xf]
                %226 = vst [vmem:[%s218 + $0xc] sm:$0xf] %v225
                %v227 = vld [vmem:[%s217 + $0x10] sm:$0xf]
                %228 = vst [vmem:[%s218 + $0x10] sm:$0xf] %v227
                %v229 = vld [vmem:[%s217 + $0x14] sm:$0xf]
                %230 = vst [vmem:[%s218 + $0x14] sm:$0xf] %v229
                %v231 = vld [vmem:[%s217 + $0x18] sm:$0xf]
                %232 = vst [vmem:[%s218 + $0x18] sm:$0xf] %v231
                %v233 = vld [vmem:[%s217 + $0x70] sm:$0xf]
                %234 = vst [vmem:[%s218 + $0x1c] sm:$0xf] %v233
                %v235 = vld [vmem:[%s217 + $0x74] sm:$0xf]
                %236 = vst [vmem:[%s218 + $0x20] sm:$0xf] %v235
                %v237 = vld [vmem:[%s217 + $0x78] sm:$0xf]
                %238 = vst [vmem:[%s218 + $0x24] sm:$0xf] %v237
                %v239 = vld [vmem:[%s217 + $0x7c] sm:$0xf]
                %240 = vst [vmem:[%s218 + $0x28] sm:$0xf] %v239
                %v241 = vld [vmem:[%s217 + $0x80] sm:$0xf]
                %242 = vst [vmem:[%s218 + $0x2c] sm:$0xf] %v241
                %v243 = vld [vmem:[%s217 + $0x84] sm:$0xf]
                %244 = vst [vmem:[%s218 + $0x30] sm:$0xf] %v243
                %v245 = vld [vmem:[%s217 + $0x88] sm:$0xf]
                %246 = vst [vmem:[%s218 + $0x34] sm:$0xf] %v245
              $region41: #{tpu_custom_call.1} parent=35 // loop_footer
                %s216 = sadd.s32 1, %s212
              $region42: #{tpu_custom_call.1} parent=35 // loop_footer_branch
                %211 = sbr.rel target = $region38
              $region43: #{tpu_custom_call.1} parent=35 // loop_exit
                _
            $region36: #{tpu_custom_call.1} parent=27 // pred_fallthru
              _
          $region28: #{tpu_custom_call.1} parent=23 // pred_fallthru
            _
          %294 = vnop
        $region24: #{tpu_custom_call.1} parent=19 // pred_fallthru
          _
      $region20: #{tpu_custom_call.1} parent=5 // pred_fallthru
        _
      %p295 = scmp.le.s32.totalorder 1, %s17
      %p296 = scmp.lt.s32.totalorder %s17, 5
      %p297 = pnand %p295, %p296
      %p298 = pneg %p297
      // Predicated region
      $region62: #{tpu_custom_call.1} parent=5 // pred_check
        _
      $region63: #{tpu_custom_call.1} parent=5 // pred_check_branch
        %300 = sbr.rel (%p297) target = $region65
      $region64: #{tpu_custom_call.1} parent=5 // pred_region
        %s301 = ssub.s32 %s17, 1
        %s302 = sand.u32 %s46, 1
        %s303 = sand.u32 %s46, 1
        %s304 = smul.addr %s303, 56
        %s305 = scalar_lea.vmem [#allocation2], %s304
        // Predicated region
        $region66: #{tpu_custom_call.1} parent=64 // pred_check
          %p306 = pneg %p59
        $region67: #{tpu_custom_call.1} parent=64 // pred_check_branch
          %308 = sbr.rel (%p306) target = $region69
        $region68: #{tpu_custom_call.1} parent=64 // pred_region
          _
        $region69: #{tpu_custom_call.1} parent=64 // pred_fallthru
          _
        %s309 = sand.u32 %s46, 1
        %s310 = sand.u32 %s46, 1
        %s311 = smul.addr %s310, 56
        %s312 = scalar_lea.vmem [#allocation2], %s311
        %p313 = pneg %p59
        %p314 = pneg %p56
        %p315 = pneg %p80
        %p316 = pneg %p77
        %p317 = pneg %p110
        %p318 = pneg %p107
        %s319 = sand.u32 %s97, 1
        %s320 = scalar_lea.sflag [#allocation4], %s319
        %s321 = sand.u32 %s97, 1
        %s322 = smul.addr %s321, 24
        %s323 = scalar_lea.vmem [#allocation3], %s322
        %p324 = pneg %p140
        %p325 = pneg %p137
        %s326 = sand.u32 %s22, 1
        %s327 = scalar_lea.sflag [#allocation6], %s326
        %s328 = sand.u32 %s127, 1
        %s329 = scalar_lea.vmem [#allocation5], %s328
        %p330 = pneg %p170
        %p331 = pneg %p167
        %s332 = sand.u32 %s22, 1
        %s333 = scalar_lea.sflag [#allocation6], %s332
        %s334 = sand.u32 %s157, 1
        %s335 = scalar_lea.vmem [#allocation7], %s334
        %s336 = smul.u32 %s26, 2
        %s337 = sadd.s32 %s336, %s27
        %s338 = smul.u32 %s26, 2
        %s339 = sadd.s32 %s338, %s27
        %s340 = smul.u32 %s26, 2
        %s341 = sadd.s32 %s340, %s27
        %s342 = smul.u32 %s26, 2
        %s343 = sadd.s32 %s342, %s27
        %v345 = vld [vmem:[%s305] sm:$0xf]
        %v346 = vld [vmem:[%s305 + $0x4] sm:$0xf]
        %v347 = vld [vmem:[%s305 + $0x8] sm:$0xf]
        %v348 = vld [vmem:[%s305 + $0xc] sm:$0xf]
        %v349 = vld [vmem:[%s305 + $0x10] sm:$0xf]
        %v350 = vld [vmem:[%s305 + $0x14] sm:$0xf]
        %v351 = vld [vmem:[%s1] sm:$0xf]
        %v352 = vld [vmem:[%s1 + $0x4] sm:$0x3]
        %s353 = scalar_lea.vmem %s305, 28 [#allocation2]
        %v354 = vld [vmem:[%s353] sm:$0xf]
        %v355 = vld [vmem:[%s353 + $0x4] sm:$0xf]
        %v356 = vld [vmem:[%s353 + $0x8] sm:$0xf]
        %v357 = vld [vmem:[%s353 + $0xc] sm:$0xf]
        %v358 = vld [vmem:[%s353 + $0x10] sm:$0xf]
        %v359 = vld [vmem:[%s353 + $0x14] sm:$0xf]
        %s360 = scalar_lea.vmem %s1, 8
        %v361 = vld [vmem:[%s360] sm:$0xf]
        %v362 = vld [vmem:[%s360 + $0x4] sm:$0x3]
        %v369 = vunpack.c.l.b16 %v354
        %v370 = vunpack.c.l.b16 %v355
        %v371 = vunpack.c.l.b16 %v356
        %v372 = vunpack.c.l.b16 %v357
        %v373 = vunpack.c.l.b16 %v358
        %v374 = vunpack.c.l.b16 %v359
        %v375 = vpack.c.b16 %v370, %v369
        %v376 = vpack.c.b16 %v372, %v371
        %v377 = vpack.c.b16 %v374, %v373
        %v380 = vunpack.c.l.b16 %v361
        %v381 = vunpack.c.l.b16 %v362
        %v382 = vpack.c.b16 %v381, %v380
        %vm383 = vcmask 97280
        %v385 = vsel %vm383, %v375, 0
        %v388 = vsel %vm383, %v376, 0
        %v391 = vsel %vm383, %v377, 0
        %vm393 = vcmask 1045504
        %v395 = vsel %vm393, %v382, 0
        %397 = vmatprep.subr.bf16.mxu0 0
        %398 = vmatpush1.bf16.msra.mxu0 %v395
        %399 = vmatprep.subr.bf16.mxu0 0
        %400 = vmatpush1.bf16.msra.mxu0 0
        %401 = vmatprep.subr.bf16.mxu0 0
        %402 = vmatpush1.bf16.msra.mxu0 0
        %403 = vmatprep.subr.bf16.mxu0 0
        %404 = vmatpush1.bf16.msra.mxu0 0
        %405 = vmatprep.subr.bf16.mxu0 0
        %406 = vmatpush1.bf16.msra.mxu0 0
        %407 = vmatprep.subr.bf16.mxu0 0
        %408 = vmatpush1.bf16.msra.mxu0 0
        %409 = vmatprep.subr.bf16.mxu0 0
        %410 = vmatpush1.bf16.msra.mxu0 0
        %411 = vmatprep.subr.bf16.mxu0 0
        %412 = vmatpush1.bf16.msra.mxu0 0
        %413 = vmatprep.subr.bf16.mxu0 0
        %414 = vmatpush1.bf16.msra.mxu0 0
        %415 = vmatprep.subr.bf16.mxu0 0
        %416 = vmatpush1.bf16.msra.mxu0 0
        %417 = vmatprep.subr.bf16.mxu0 0
        %418 = vmatpush1.bf16.msra.mxu0 0
        %419 = vmatprep.subr.bf16.mxu0 0
        %420 = vmatpush1.bf16.msra.mxu0 0
        %421 = vmatprep.subr.bf16.mxu0 0
        %422 = vmatpush1.bf16.msra.mxu0 0
        %423 = vmatprep.subr.bf16.mxu0 0
        %424 = vmatpush1.bf16.msra.mxu0 0
        %425 = vmatprep.subr.bf16.mxu0 0
        %426 = vmatpush1.bf16.msra.mxu0 0
        %427 = vmatprep.subr.bf16.mxu0 0
        %428 = vmatpush1.bf16.msra.mxu0 0
        %429 = vmatprep.mubr.bf16.mxu0 0
        %430 = vmatmul.mubr.bf16.gmra.mrb[0].mxu0 %v385
        %v431 = vpop.f32.mrb[0].mxu0
        %v432 = vadd.f32 0.0, %v431
        %v433 = vpop.f32.mrb[0].mxu0
        %v434 = vpop.f32.mrb[0].mxu0
        %v435 = vadd.f32 0.0, %v434
        %v436 = vpop.f32.mrb[0].mxu0
        %437 = vmatprep.mubr.bf16.mxu0 0
        %438 = vmatmul.mubr.bf16.gmra.mrb[0].mxu0 %v388
        %v439 = vpop.f32.mrb[0].mxu0
        %v440 = vadd.f32 0.0, %v439
        %v441 = vpop.f32.mrb[0].mxu0
        %v442 = vpop.f32.mrb[0].mxu0
        %v443 = vadd.f32 0.0, %v442
        %v444 = vpop.f32.mrb[0].mxu0
        %445 = vmatprep.mubr.bf16.mxu0 0
        %446 = vmatmul.mubr.bf16.gmra.mrb[0].mxu0 %v391
        %v447 = vpop.f32.mrb[0].mxu0
        %v448 = vadd.f32 0.0, %v447
        %v449 = vpop.f32.mrb[0].mxu0
        %v450 = vpop.f32.mrb[0].mxu0
        %v451 = vadd.f32 0.0, %v450
        %v452 = vpop.f32.mrb[0].mxu0
        %453 = vdwg.mxu0
        %v460 = vunpack.c.l.b16 %v345
        %v461 = vunpack.c.l.b16 %v346
        %v462 = vunpack.c.l.b16 %v347
        %v463 = vunpack.c.l.b16 %v348
        %v464 = vunpack.c.l.b16 %v349
        %v465 = vunpack.c.l.b16 %v350
        %v466 = vpack.c.b16 %v461, %v460
        %v467 = vpack.c.b16 %v463, %v462
        %v468 = vpack.c.b16 %v465, %v464
        %v471 = vunpack.c.l.b16 %v351
        %v472 = vunpack.c.l.b16 %v352
        %v473 = vpack.c.b16 %v472, %v471
        %v475 = vsel %vm383, %v466, 0
        %v478 = vsel %vm383, %v467, 0
        %v481 = vsel %vm383, %v468, 0
        %v484 = vsel %vm393, %v473, 0
        %486 = vmatprep.subr.bf16.mxu0 0
        %487 = vmatpush1.bf16.msra.mxu0 %v484
        %488 = vmatprep.subr.bf16.mxu0 0
        %489 = vmatpush1.bf16.msra.mxu0 0
        %490 = vmatprep.subr.bf16.mxu0 0
        %491 = vmatpush1.bf16.msra.mxu0 0
        %492 = vmatprep.subr.bf16.mxu0 0
        %493 = vmatpush1.bf16.msra.mxu0 0
        %494 = vmatprep.subr.bf16.mxu0 0
        %495 = vmatpush1.bf16.msra.mxu0 0
        %496 = vmatprep.subr.bf16.mxu0 0
        %497 = vmatpush1.bf16.msra.mxu0 0
        %498 = vmatprep.subr.bf16.mxu0 0
        %499 = vmatpush1.bf16.msra.mxu0 0
        %500 = vmatprep.subr.bf16.mxu0 0
        %501 = vmatpush1.bf16.msra.mxu0 0
        %502 = vmatprep.subr.bf16.mxu0 0
        %503 = vmatpush1.bf16.msra.mxu0 0
        %504 = vmatprep.subr.bf16.mxu0 0
        %505 = vmatpush1.bf16.msra.mxu0 0
        %506 = vmatprep.subr.bf16.mxu0 0
        %507 = vmatpush1.bf16.msra.mxu0 0
        %508 = vmatprep.subr.bf16.mxu0 0
        %509 = vmatpush1.bf16.msra.mxu0 0
        %510 = vmatprep.subr.bf16.mxu0 0
        %511 = vmatpush1.bf16.msra.mxu0 0
        %512 = vmatprep.subr.bf16.mxu0 0
        %513 = vmatpush1.bf16.msra.mxu0 0
        %514 = vmatprep.subr.bf16.mxu0 0
        %515 = vmatpush1.bf16.msra.mxu0 0
        %516 = vmatprep.subr.bf16.mxu0 0
        %517 = vmatpush1.bf16.msra.mxu0 0
        %518 = vmatprep.mubr.bf16.mxu0 0
        %519 = vmatmul.mubr.bf16.gmra.mrb[0].mxu0 %v475
        %v520 = vpop.f32.mrb[0].mxu0
        %v521 = vadd.f32 %v432, %v520
        %v522 = vpop.f32.mrb[0].mxu0
        %v523 = vpop.f32.mrb[0].mxu0
        %v524 = vadd.f32 %v435, %v523
        %v525 = vpop.f32.mrb[0].mxu0
        %526 = vmatprep.mubr.bf16.mxu0 0
        %527 = vmatmul.mubr.bf16.gmra.mrb[0].mxu0 %v478
        %v528 = vpop.f32.mrb[0].mxu0
        %v529 = vadd.f32 %v440, %v528
        %v530 = vpop.f32.mrb[0].mxu0
        %v531 = vpop.f32.mrb[0].mxu0
        %v532 = vadd.f32 %v443, %v531
        %v533 = vpop.f32.mrb[0].mxu0
        %534 = vmatprep.mubr.bf16.mxu0 0
        %535 = vmatmul.mubr.bf16.gmra.mrb[0].mxu0 %v481
        %v536 = vpop.f32.mrb[0].mxu0
        %v537 = vadd.f32 %v448, %v536
        %v538 = vpop.f32.mrb[0].mxu0
        %v539 = vpop.f32.mrb[0].mxu0
        %v540 = vadd.f32 %v451, %v539
        %v541 = vpop.f32.mrb[0].mxu0
        %542 = vdwg.mxu0
        %v543 = vld [vmem:[%s305 + $0x4] sm:$0xf]
        %v544 = vld [vmem:[%s305 + $0x8] sm:$0xf]
        %v545 = vld [vmem:[%s305 + $0xc] sm:$0xf]
        %v546 = vld [vmem:[%s305 + $0x10] sm:$0xf]
        %v547 = vld [vmem:[%s305 + $0x14] sm:$0xf]
        %v548 = vld [vmem:[%s305 + $0x18] sm:$0xf]
        %s549 = scalar_lea.vmem %s1, 16
        %v550 = vld [vmem:[%s549] sm:$0xf]
        %v551 = vld [vmem:[%s549 + $0x4] sm:$0x3]
        %v558 = vunpack.c.l.b16 %v543
        %v559 = vunpack.c.l.b16 %v544
        %v560 = vunpack.c.l.b16 %v545
        %v561 = vunpack.c.l.b16 %v546
        %v562 = vunpack.c.l.b16 %v547
        %v563 = vunpack.c.l.b16 %v548
        %v564 = vpack.c.b16 %v559, %v558
        %v565 = vpack.c.b16 %v561, %v560
        %v566 = vpack.c.b16 %v563, %v562
        %v569 = vunpack.c.l.b16 %v550
        %v570 = vunpack.c.l.b16 %v551
        %v571 = vpack.c.b16 %v570, %v569
        %v573 = vsel %vm383, %v564, 0
        %v576 = vsel %vm383, %v565, 0
        %v579 = vsel %vm383, %v566, 0
        %v582 = vsel %vm393, %v571, 0
        %584 = vmatprep.subr.bf16.mxu0 0
        %585 = vmatpush1.bf16.msra.mxu0 %v582
        %586 = vmatprep.subr.bf16.mxu0 0
        %587 = vmatpush1.bf16.msra.mxu0 0
        %588 = vmatprep.subr.bf16.mxu0 0
        %589 = vmatpush1.bf16.msra.mxu0 0
        %590 = vmatprep.subr.bf16.mxu0 0
        %591 = vmatpush1.bf16.msra.mxu0 0
        %592 = vmatprep.subr.bf16.mxu0 0
        %593 = vmatpush1.bf16.msra.mxu0 0
        %594 = vmatprep.subr.bf16.mxu0 0
        %595 = vmatpush1.bf16.msra.mxu0 0
        %596 = vmatprep.subr.bf16.mxu0 0
        %597 = vmatpush1.bf16.msra.mxu0 0
        %598 = vmatprep.subr.bf16.mxu0 0
        %599 = vmatpush1.bf16.msra.mxu0 0
        %600 = vmatprep.subr.bf16.mxu0 0
        %601 = vmatpush1.bf16.msra.mxu0 0
        %602 = vmatprep.subr.bf16.mxu0 0
        %603 = vmatpush1.bf16.msra.mxu0 0
        %604 = vmatprep.subr.bf16.mxu0 0
        %605 = vmatpush1.bf16.msra.mxu0 0
        %606 = vmatprep.subr.bf16.mxu0 0
        %607 = vmatpush1.bf16.msra.mxu0 0
        %608 = vmatprep.subr.bf16.mxu0 0
        %609 = vmatpush1.bf16.msra.mxu0 0
        %610 = vmatprep.subr.bf16.mxu0 0
        %611 = vmatpush1.bf16.msra.mxu0 0
        %612 = vmatprep.subr.bf16.mxu0 0
        %613 = vmatpush1.bf16.msra.mxu0 0
        %614 = vmatprep.subr.bf16.mxu0 0
        %615 = vmatpush1.bf16.msra.mxu0 0
        %616 = vmatprep.mubr.bf16.mxu0 0
        %617 = vmatmul.mubr.bf16.gmra.mrb[0].mxu0 %v573
        %v618 = vpop.f32.mrb[0].mxu0
        %v619 = vadd.f32 0.0, %v618
        %v620 = vpop.f32.mrb[0].mxu0
        %v621 = vpop.f32.mrb[0].mxu0
        %v622 = vadd.f32 0.0, %v621
        %v623 = vpop.f32.mrb[0].mxu0
        %624 = vmatprep.mubr.bf16.mxu0 0
        %625 = vmatmul.mubr.bf16.gmra.mrb[0].mxu0 %v576
        %v626 = vpop.f32.mrb[0].mxu0
        %v627 = vadd.f32 0.0, %v626
        %v628 = vpop.f32.mrb[0].mxu0
        %v629 = vpop.f32.mrb[0].mxu0
        %v630 = vadd.f32 0.0, %v629
        %v631 = vpop.f32.mrb[0].mxu0
        %632 = vmatprep.mubr.bf16.mxu0 0
        %633 = vmatmul.mubr.bf16.gmra.mrb[0].mxu0 %v579
        %v634 = vpop.f32.mrb[0].mxu0
        %v635 = vadd.f32 0.0, %v634
        %v636 = vpop.f32.mrb[0].mxu0
        %v637 = vpop.f32.mrb[0].mxu0
        %v638 = vadd.f32 0.0, %v637
        %v639 = vpop.f32.mrb[0].mxu0
        %640 = vdwg.mxu0
        %v641 = vadd.f32 %v521, %v619
        %v642 = vadd.f32 %v524, %v622
        %v643 = vadd.f32 %v529, %v627
        %v644 = vadd.f32 %v532, %v630
        %v645 = vadd.f32 %v537, %v635
        %v646 = vadd.f32 %v540, %v638
        %v647 = vpack.c.bf16 %v642, %v641
        %v648 = vpack.c.bf16 %v644, %v643
        %v649 = vpack.c.bf16 %v646, %v645
        %v653 = vunpack.c.l.b16 %v647
        %v654 = vunpack.c.h.b16 %v647
        %v655 = vunpack.c.l.b16 %v648
        %v656 = vunpack.c.h.b16 %v648
        %v657 = vunpack.c.l.b16 %v649
        %v658 = vunpack.c.h.b16 %v649
        %v659 = vpack.c.b16 %v653, %v653
        %v660 = vpack.c.b16 %v654, %v654
        %v661 = vpack.c.b16 %v655, %v655
        %v662 = vpack.c.b16 %v656, %v656
        %v663 = vpack.c.b16 %v657, %v657
        %v664 = vpack.c.b16 %v658, %v658
        %671 = vst [vmem:[%s323] sm:$0xf] %v659
        %672 = vst [vmem:[%s323 + $0x4] sm:$0xf] %v660
        %673 = vst [vmem:[%s323 + $0x8] sm:$0xf] %v661
        %674 = vst [vmem:[%s323 + $0xc] sm:$0xf] %v662
        %675 = vst [vmem:[%s323 + $0x10] sm:$0xf] %v663
        %676 = vst [vmem:[%s323 + $0x14] sm:$0xf] %v664
        %p677 = scmp.eq.s32.totalorder %s27, 1
        // Predicated region
        $region70: #{tpu_custom_call.1} parent=64 // pred_check
          %p678 = pneg %p677
        $region71: #{tpu_custom_call.1} parent=64 // pred_check_branch
          %680 = sbr.rel (%p678) target = $region73
        $region72: #{tpu_custom_call.1} parent=64 // pred_region
          %v681 = vlaneseq
          %v682 = vshrl.u32 %v681, 7
          %v683 = vadd.s32 %v682, 8
          %v684 = vadd.s32 %v682, 16
          %v685 = vadd.s32 %v682, 24
          %v686 = vadd.s32 %v682, 32
          %v687 = vadd.s32 %v682, 40
          %s688 = smul.u32 %s27, 6
          %s689 = ssub.s32 8, %s688
          %s690 = smul.u32 %s689, 8
          %v691 = vstv %s690
          %vm692 = vcmp.lt.s32.totalorder %v682, %v691
          %vm693 = vcmp.lt.s32.totalorder %v683, %v691
          %vm694 = vcmp.lt.s32.totalorder %v684, %v691
          %vm695 = vcmp.lt.s32.totalorder %v685, %v691
          %vm696 = vcmp.lt.s32.totalorder %v686, %v691
          %vm697 = vcmp.lt.s32.totalorder %v687, %v691
          %v698 = vsel %vm692, 1, 0
          %v699 = vsel %vm693, 1, 0
          %v700 = vsel %vm694, 1, 0
          %v701 = vsel %vm695, 1, 0
          %v702 = vsel %vm696, 1, 0
          %v703 = vsel %vm697, 1, 0
          %v704 = vcvt.s32.f32 %v698
          %v705 = vcvt.s32.f32 %v699
          %v706 = vcvt.s32.f32 %v700
          %v707 = vcvt.s32.f32 %v701
          %v708 = vcvt.s32.f32 %v702
          %v709 = vcvt.s32.f32 %v703
          %v710 = vmul.f32 %v641, %v704
          %v711 = vmul.f32 %v642, %v705
          %v712 = vmul.f32 %v643, %v706
          %v713 = vmul.f32 %v644, %v707
          %v714 = vmul.f32 %v645, %v708
          %v715 = vmul.f32 %v646, %v709
          %v716 = vadd.f32 %v710, %v711
          %v717 = vadd.f32 %v716, %v712
          %v718 = vadd.f32 %v717, %v713
          %v719 = vadd.f32 %v718, %v714
          %v720 = vadd.f32 %v719, %v715
          %v721 = vrot.slane %v720, 4
          %v722 = vadd.f32 %v720, %v721
          %v723 = vrot.slane %v722, 2
          %v724 = vadd.f32 %v722, %v723
          %v725 = vrot.slane %v724, 1
          %v726 = vadd.f32 %v724, %v725
          %727 = vst [vmem:[%s329] sm:$0x1] %v726
          %v728 = vmul.f32 %v710, %v641
          %v729 = vmul.f32 %v711, %v642
          %v730 = vmul.f32 %v712, %v643
          %v731 = vmul.f32 %v713, %v644
          %v732 = vmul.f32 %v714, %v645
          %v733 = vmul.f32 %v715, %v646
          %v734 = vadd.f32 %v728, %v729
          %v735 = vadd.f32 %v734, %v730
          %v736 = vadd.f32 %v735, %v731
          %v737 = vadd.f32 %v736, %v732
          %v738 = vadd.f32 %v737, %v733
          %v739 = vrot.slane %v738, 4
          %v740 = vadd.f32 %v738, %v739
          %v741 = vrot.slane %v740, 2
          %v742 = vadd.f32 %v740, %v741
          %v743 = vrot.slane %v742, 1
          %v744 = vadd.f32 %v742, %v743
          %745 = vst [vmem:[%s335] sm:$0x1] %v744
        $region73: #{tpu_custom_call.1} parent=64 // pred_fallthru
          _
        %p746 = scmp.ne.s32.totalorder %s27, 1
        // Predicated region
        $region74: #{tpu_custom_call.1} parent=64 // pred_check
          %p747 = pneg %p746
        $region75: #{tpu_custom_call.1} parent=64 // pred_check_branch
          %749 = sbr.rel (%p747) target = $region77
        $region76: #{tpu_custom_call.1} parent=64 // pred_region
          %v750 = vadd.f32 %v641, %v642
          %v751 = vadd.f32 %v750, %v643
          %v752 = vadd.f32 %v751, %v644
          %v753 = vadd.f32 %v752, %v645
          %v754 = vadd.f32 %v753, %v646
          %v755 = vrot.slane %v754, 4
          %v756 = vadd.f32 %v754, %v755
          %v757 = vrot.slane %v756, 2
          %v758 = vadd.f32 %v756, %v757
          %v759 = vrot.slane %v758, 1
          %v760 = vadd.f32 %v758, %v759
          %761 = vst [vmem:[%s329] sm:$0x1] %v760
          %v762 = vmul.f32 %v641, %v641
          %v763 = vmul.f32 %v642, %v642
          %v764 = vmul.f32 %v643, %v643
          %v765 = vmul.f32 %v644, %v644
          %v766 = vmul.f32 %v645, %v645
          %v767 = vmul.f32 %v646, %v646
          %v768 = vadd.f32 %v762, %v763
          %v769 = vadd.f32 %v768, %v764
          %v770 = vadd.f32 %v769, %v765
          %v771 = vadd.f32 %v770, %v766
          %v772 = vadd.f32 %v771, %v767
          %v773 = vrot.slane %v772, 4
          %v774 = vadd.f32 %v772, %v773
          %v775 = vrot.slane %v774, 2
          %v776 = vadd.f32 %v774, %v775
          %v777 = vrot.slane %v776, 1
          %v778 = vadd.f32 %v776, %v777
          %779 = vst [vmem:[%s335] sm:$0x1] %v778
        $region77: #{tpu_custom_call.1} parent=64 // pred_fallthru
          _
        %s780 = sand.u32 %s97, 1
        %s781 = scalar_lea.sflag [#allocation4], %s780
        %s782 = sand.u32 %s97, 1
        %s783 = smul.addr %s782, 24
        %s784 = scalar_lea.vmem [#allocation3], %s783
        %s785 = sand.u32 %s22, 1
        %s786 = scalar_lea.sflag [#allocation6], %s785
        %s787 = sand.u32 %s127, 1
        %s788 = scalar_lea.vmem [#allocation5], %s787
        %s789 = sand.u32 %s22, 1
        %s790 = scalar_lea.sflag [#allocation6], %s789
        %s791 = sand.u32 %s157, 1
        %s792 = scalar_lea.vmem [#allocation7], %s791
        // Predicated region
        $region78: #{tpu_custom_call.1} parent=64 // pred_check
          %p793 = pneg %p107
        $region79: #{tpu_custom_call.1} parent=64 // pred_check_branch
          %795 = sbr.rel (%p793) target = $region81
        $region80: #{tpu_custom_call.1} parent=64 // pred_region
          %s796 = smul.u32 %s26, 2
          %s797 = sadd.s32 %s796, %s27
          %s799 = ssub.s32 384, 384
          %800 = vsyncadd %s781, %s799
          %s801 = smul.addr %s797, 6
          %s802 = smul.addr %s801, 64
          %s803 = scalar_lea.hbm %s2, %s802
          %s804 = sshll.u32 %s784, 4
          %s805 = int_to_ptr.vmem [resolvable:$true] %s804
          %810 = dma.vmem_to_hbm [thread:$0]  %s805, 384, %s803, %s781, 64, 64, 4
        $region81: #{tpu_custom_call.1} parent=64 // pred_fallthru
          _
        // Predicated region
        $region82: #{tpu_custom_call.1} parent=64 // pred_check
          %p811 = pneg %p137
        $region83: #{tpu_custom_call.1} parent=64 // pred_check_branch
          %813 = sbr.rel (%p811) target = $region85
        $region84: #{tpu_custom_call.1} parent=64 // pred_region
          %s814 = smul.u32 %s26, 2
          %s815 = sadd.s32 %s814, %s27
          %s817 = ssub.s32 16, 16
          %818 = vsyncadd %s786, %s817
          %s819 = smul.addr %s815, 16
          %s820 = scalar_lea.hbm %s3, %s819
          %s822 = sshll.u32 %s788, 4
          %s823 = int_to_ptr.vmem [resolvable:$true] %s822
          %825 = dma.vmem_to_hbm [thread:$0]  %s823, 16, %s820, %s786
        $region85: #{tpu_custom_call.1} parent=64 // pred_fallthru
          _
        // Predicated region
        $region86: #{tpu_custom_call.1} parent=64 // pred_check
          %p826 = pneg %p167
        $region87: #{tpu_custom_call.1} parent=64 // pred_check_branch
          %828 = sbr.rel (%p826) target = $region89
        $region88: #{tpu_custom_call.1} parent=64 // pred_region
          %s829 = smul.u32 %s26, 2
          %s830 = sadd.s32 %s829, %s27
          %s832 = ssub.s32 16, 16
          %833 = vsyncadd %s790, %s832
          %s834 = smul.addr %s830, 16
          %s835 = scalar_lea.hbm %s4, %s834
          %s837 = sshll.u32 %s792, 4
          %s838 = int_to_ptr.vmem [resolvable:$true] %s837
          %840 = dma.vmem_to_hbm [thread:$0]  %s838, 16, %s835, %s790
        $region89: #{tpu_custom_call.1} parent=64 // pred_fallthru
          _
      $region65: #{tpu_custom_call.1} parent=5 // pred_fallthru
        _
      %p841 = scmp.le.s32.totalorder 2, %s17
      // Predicated region
      $region90: #{tpu_custom_call.1} parent=5 // pred_check
        %p842 = pneg %p841
      $region91: #{tpu_custom_call.1} parent=5 // pred_check_branch
        %844 = sbr.rel (%p842) target = $region93
      $region92: #{tpu_custom_call.1} parent=5 // pred_region
        %s845 = ssub.s32 %s17, 2
        // Predicated region
        $region94: #{tpu_custom_call.1} parent=92 // pred_check
          %p846 = pneg %p113
        $region95: #{tpu_custom_call.1} parent=92 // pred_check_branch
          %848 = sbr.rel (%p846) target = $region97
        $region96: #{tpu_custom_call.1} parent=92 // pred_region
          %s849 = sand.u32 %s98, 1
          %s850 = scalar_lea.sflag [#allocation4], %s849
          %s851 = sand.u32 %s98, 1
          %s852 = smul.addr %s851, 24
          %s853 = scalar_lea.vmem [#allocation3], %s852
          %854 = dma.done %s850, 384
        $region97: #{tpu_custom_call.1} parent=92 // pred_fallthru
          _
        // Predicated region
        $region98: #{tpu_custom_call.1} parent=92 // pred_check
          %p855 = pneg %p143
        $region99: #{tpu_custom_call.1} parent=92 // pred_check_branch
          %857 = sbr.rel (%p855) target = $region101
        $region100: #{tpu_custom_call.1} parent=92 // pred_region
          %s858 = sand.u32 %s23, 1
          %s859 = scalar_lea.sflag [#allocation6], %s858
          %s860 = sand.u32 %s128, 1
          %s861 = scalar_lea.vmem [#allocation5], %s860
          %862 = dma.done %s859, 16
        $region101: #{tpu_custom_call.1} parent=92 // pred_fallthru
          _
        // Predicated region
        $region102: #{tpu_custom_call.1} parent=92 // pred_check
          %p863 = pneg %p173
        $region103: #{tpu_custom_call.1} parent=92 // pred_check_branch
          %865 = sbr.rel (%p863) target = $region105
        $region104: #{tpu_custom_call.1} parent=92 // pred_region
          %s866 = sand.u32 %s23, 1
          %s867 = scalar_lea.sflag [#allocation6], %s866
          %s868 = sand.u32 %s158, 1
          %s869 = scalar_lea.vmem [#allocation7], %s868
          %870 = dma.done %s867, 16
        $region105: #{tpu_custom_call.1} parent=92 // pred_fallthru
          _
      $region93: #{tpu_custom_call.1} parent=5 // pred_fallthru
        _
    $region6: #{tpu_custom_call.1} parent=1 // loop_footer
      %s21 = sadd.s32 1, %s17
    $region7: #{tpu_custom_call.1} parent=1 // loop_footer_branch
      %16 = sbr.rel target = $region3
    $region8: #{tpu_custom_call.1} parent=1 // loop_exit
      _
    %871 = vsyncpa [#allocation4], 1
    %s872 = scalar_lea.sflag [#allocation4], 1
    %873 = vsyncpa %s872, 1
    %874 = vsyncpa [#allocation6], 1
    %s875 = scalar_lea.sflag [#allocation6], 1
    %876 = vsyncpa %s875, 1

</llo_original>
